<compile_context>
chip_gen: v6e
topology: v6e:2x2x1
jax: 0.10.0
libtpu: 0.0.40
codegen_flags: <defaults>
</compile_context>

<pallas_src>
import numpy as np
import jax
import jax.numpy as jnp
from jax.experimental import pallas as pl
from jax.experimental.pallas import tpu as pltpu

BN_EPS = 1e-5


# ----------------------------- Pallas kernel --------------------------------

def _make_fused_kernel(num_layers: int, num_tasks: int):
    """Fused forward kernel; GCN layers and task heads are statically unrolled."""

    def kernel(*refs):
        a_ref = refs[0]                       # [N, N]   normalized adjacency
        x_ref = refs[1]                       # [N, Fin] node features
        idx = 2

        # ---- GCN encoder: h = ReLU(A @ (h @ W') + b')   (BN folded, dropout = id) ----
        h = x_ref[...]
        for _ in range(num_layers):
            w_ref, b_ref = refs[idx], refs[idx + 1]
            idx += 2
            h = jnp.dot(h, w_ref[...], preferred_element_type=jnp.float32)
            h = jnp.dot(a_ref[...], h, preferred_element_type=jnp.float32) + b_ref[...]
            h = jnp.maximum(h, 0.0)

        # ---- global_mean_pool as dense matmul: [G, N] @ [N, H] ----
        p_ref = refs[idx]; idx += 1
        emb = jnp.dot(p_ref[...], h, preferred_element_type=jnp.float32)      # [G, H]

        # ---- task heads: Linear -> ReLU -> (Dropout=id) -> Linear, all tasks ----
        w1_ref, b1_ref, w2_ref, b2_ref = refs[idx:idx + 4]
        out_ref = refs[idx + 4]                                               # [G, T*O]
        outs = []
        for t in range(num_tasks):                                            # static unroll
            hid = jnp.dot(emb, w1_ref[t], preferred_element_type=jnp.float32) + b1_ref[t]
            hid = jnp.maximum(hid, 0.0)
            outs.append(jnp.dot(hid, w2_ref[t], preferred_element_type=jnp.float32)
                        + b2_ref[t])
        out_ref[...] = jnp.concatenate(outs, axis=-1)                         # single store

    return kernel


# ------------------------------ wrappers ------------------------------------

def fold_batchnorm(w, b, gamma, beta, running_mean, running_var):
    """Fold eval-mode BatchNorm1d (affine, running stats) into the GCN weight/bias."""
    s = gamma / jnp.sqrt(running_var + BN_EPS)         # [1, H], per output feature
    return w * s, (b - running_mean) * s + beta        # column scaling commutes with A @ .


def multitask_gnn_forward_dense(x, a_norm, pool_mat, gcn_wb, w1, b1, w2, b2):
    """Fused forward; returns the dense [G, T*O_MAX] task-head output slab."""
    num_layers = len(gcn_wb)
    T, _, O = w2.shape
    G = pool_mat.shape[0]

    args = [a_norm, x]
    for (w, b) in gcn_wb:
        args += [w, b]
    args += [pool_mat, w1, b1, w2, b2]

    vmem = pl.BlockSpec(memory_space=pltpu.MemorySpace.VMEM)
    return pl.pallas_call(
        _make_fused_kernel(num_layers, T),
        out_shape=jax.ShapeDtypeStruct((G, T * O), jnp.float32),
        in_specs=[vmem] * len(args),
        out_specs=vmem,
    )(*args)


def multitask_gnn_forward(x, a_norm, pool_mat, gcn_wb, w1, b1, w2, b2,
                          task_ids, out_dims):
    """Full forward; returns a list of per-graph predictions (like the PyTorch model).

    task_ids / out_dims must be host (numpy / python) values, matching the PyTorch
    module's `.item()`-based per-graph head dispatch.
    """
    dense = multitask_gnn_forward_dense(x, a_norm, pool_mat, gcn_wb, w1, b1, w2, b2)
    T, _, O = w2.shape
    outputs = []
    for i in range(dense.shape[0]):
        t = int(task_ids[i])                                   # host value, no device sync
        outputs.append(dense[i:i + 1, t * O: t * O + out_dims[t]])   # [1, out_dim(task)]
    return outputs


# ------------------------------ main / demo ---------------------------------

if __name__ == "__main__":
    key = jax.random.PRNGKey(0)
    N, F_IN, H, G = 32, 16, 32, 4            # nodes, input_dim, hidden_dim, num_graphs
    NUM_LAYERS = 2
    H2 = H // 2                               # TaskHead hidden_dim = input_dim // 2
    task_types = ["regression", "classification", "regression"]
    T = len(task_types)
    out_dims = [2 if tt == "classification" else 1 for tt in task_types]
    O_MAX = max(out_dims)

    keys = jax.random.split(key, 20)

    # ----- graph data (deterministic, small) -----
    x = jax.random.normal(keys[0], (N, F_IN), jnp.float32)
    batch_np = np.repeat(np.arange(G), N // G)                       # node -> graph id
    src = np.arange(N - 1)
    dst = src + 1
    keep = batch_np[src] == batch_np[dst]                            # chain edges per graph
    src, dst = src[keep], dst[keep]
    edge_index = np.stack([np.concatenate([src, dst]),
                           np.concatenate([dst, src])]).astype(np.int32)
    task_ids = np.array([0, 1, 2, 1], dtype=np.int32)                # one task per graph

    # ----- glue: dense normalized adjacency (GCN norm with self-loops) -----
    A = jnp.zeros((N, N), jnp.float32).at[edge_index[0], edge_index[1]].set(1.0)
    A = A + jnp.eye(N, dtype=jnp.float32)
    deg = A.sum(axis=1)
    d_inv_sqrt = 1.0 / jnp.sqrt(deg)
    A_norm = d_inv_sqrt[:, None] * A * d_inv_sqrt[None, :]

    # ----- glue: global_mean_pool matrix -----
    batch = jnp.asarray(batch_np)
    onehot = (batch[None, :] == jnp.arange(G)[:, None]).astype(jnp.float32)
    P = onehot / onehot.sum(axis=1, keepdims=True)                   # [G, N]

    # ----- deterministic parameter init -----
    def init(k, shape, scale=0.1):
        return scale * jax.random.normal(k, shape, jnp.float32)

    gcn_raw = []
    in_dims = [F_IN] + [H] * (NUM_LAYERS - 1)
    for li in range(NUM_LAYERS):
        w = init(keys[1 + 2 * li], (in_dims[li], H))
        b = init(keys[2 + 2 * li], (1, H))
        gamma = jnp.ones((1, H), jnp.float32)                        # BN affine
        beta = jnp.zeros((1, H), jnp.float32)
        rmean = jnp.zeros((1, H), jnp.float32)                       # BN running stats
        rvar = jnp.ones((1, H), jnp.float32)
        gcn_raw.append((w, b, gamma, beta, rmean, rvar))

    # fold BatchNorm into GCN weights/bias (host-side, once)
    gcn_wb = [fold_batchnorm(*p) for p in gcn_raw]

    w1 = init(keys[6], (T, H, H2))
    b1 = init(keys[7], (T, 1, H2))
    w2_list, b2_list = [], []
    for t in range(T):
        od = out_dims[t]
        w2_t = init(keys[8 + t], (H2, od))
        b2_t = init(keys[12 + t], (1, od))
        # pad regression heads to O_MAX output columns (zero-padded, sliced off later)
        w2_list.append(jnp.pad(w2_t, ((0, 0), (0, O_MAX - od))))
        b2_list.append(jnp.pad(b2_t, ((0, 0), (0, O_MAX - od))))
    w2 = jnp.stack(w2_list)                                          # [T, H2, O_MAX]
    b2 = jnp.stack(b2_list)                                          # [T, 1,  O_MAX]

    # ----- run fused Pallas forward (single kernel launch) -----
    outputs = multitask_gnn_forward(x, A_norm, P, gcn_wb, w1, b1, w2, b2,
                                    task_ids, out_dims)
    jax.block_until_ready(outputs)

    # ----- pure-JAX reference check (unfolded BN formulation) -----
    def ref_forward():
        h = x
        for (w, b, gamma, beta, rmean, rvar) in gcn_raw:
            h = A_norm @ (h @ w) + b
            h = (h - rmean) * (gamma / jnp.sqrt(rvar + BN_EPS)) + beta
            h = jnp.maximum(h, 0.0)
        emb = P @ h
        outs = []
        for i in range(G):
            t = int(task_ids[i])
            hid = jnp.maximum(emb[i:i + 1] @ w1[t] + b1[t], 0.0)
            outs.append(hid @ w2[t, :, :out_dims[t]] + b2[t, :, :out_dims[t]])
        return outs

    refs = ref_forward()
    for got, want in zip(outputs, refs):
        assert got.shape == want.shape, (got.shape, want.shape)
        assert jnp.allclose(got, want, atol=1e-4, rtol=1e-4), "mismatch vs reference"

    print("KERNEL_OK")
</pallas_src>

<mosaic_0001>
module attributes {stable_mosaic.version = 11 : i64} {
  func.func @kernel(%arg0: memref<32x32xf32, #tpu.memory_space<vmem>>, %arg1: memref<32x16xf32, #tpu.memory_space<vmem>>, %arg2: memref<16x32xf32, #tpu.memory_space<vmem>>, %arg3: memref<1x32xf32, #tpu.memory_space<vmem>>, %arg4: memref<32x32xf32, #tpu.memory_space<vmem>>, %arg5: memref<1x32xf32, #tpu.memory_space<vmem>>, %arg6: memref<4x32xf32, #tpu.memory_space<vmem>>, %arg7: memref<3x32x16xf32, #tpu.memory_space<vmem>>, %arg8: memref<3x1x16xf32, #tpu.memory_space<vmem>>, %arg9: memref<3x16x2xf32, #tpu.memory_space<vmem>>, %arg10: memref<3x1x2xf32, #tpu.memory_space<vmem>>, %arg11: memref<4x6xf32, #tpu.memory_space<vmem>>) attributes {dimension_semantics = [], scalar_prefetch = 0 : i64, scratch_operands = 0 : i64, tpu.core_type = #tpu.core_type<tc>} {
    %c0 = arith.constant 0 : index
    %c0_0 = arith.constant 0 : index
    %0 = vector.load %arg1[%c0, %c0_0] : memref<32x16xf32, #tpu.memory_space<vmem>>, vector<32x16xf32>
    %c0_1 = arith.constant 0 : index
    %c0_2 = arith.constant 0 : index
    %1 = vector.load %arg2[%c0_1, %c0_2] : memref<16x32xf32, #tpu.memory_space<vmem>>, vector<16x32xf32>
    %cst = arith.constant dense<0.000000e+00> : vector<32x32xf32>
    %2 = tpu.matmul %0, %1, %cst {dimension_numbers = #tpu.dot_dimension_numbers<[1], [0], [0], [1], [0, 0, 1, 1], [], []>} : vector<32x16xf32>, vector<16x32xf32>, vector<32x32xf32> -> vector<32x32xf32>
    %c0_3 = arith.constant 0 : index
    %c0_4 = arith.constant 0 : index
    %3 = vector.load %arg0[%c0_3, %c0_4] : memref<32x32xf32, #tpu.memory_space<vmem>>, vector<32x32xf32>
    %cst_5 = arith.constant dense<0.000000e+00> : vector<32x32xf32>
    %4 = tpu.matmul %3, %2, %cst_5 {dimension_numbers = #tpu.dot_dimension_numbers<[1], [0], [0], [1], [0, 0, 1, 1], [], []>} : vector<32x32xf32>, vector<32x32xf32>, vector<32x32xf32> -> vector<32x32xf32>
    %c0_6 = arith.constant 0 : index
    %c0_7 = arith.constant 0 : index
    %5 = vector.load %arg3[%c0_6, %c0_7] : memref<1x32xf32, #tpu.memory_space<vmem>>, vector<1x32xf32>
    %6 = vector.broadcast %5 : vector<1x32xf32> to vector<32x32xf32>
    %7 = arith.addf %4, %6 : vector<32x32xf32>
    %cst_8 = arith.constant 0.000000e+00 : f32
    %8 = vector.broadcast %cst_8 : f32 to vector<32x32xf32>
    %9 = arith.maximumf %7, %8 : vector<32x32xf32>
    %c0_9 = arith.constant 0 : index
    %c0_10 = arith.constant 0 : index
    %10 = vector.load %arg4[%c0_9, %c0_10] : memref<32x32xf32, #tpu.memory_space<vmem>>, vector<32x32xf32>
    %cst_11 = arith.constant dense<0.000000e+00> : vector<32x32xf32>
    %11 = tpu.matmul %9, %10, %cst_11 {dimension_numbers = #tpu.dot_dimension_numbers<[1], [0], [0], [1], [0, 0, 1, 1], [], []>} : vector<32x32xf32>, vector<32x32xf32>, vector<32x32xf32> -> vector<32x32xf32>
    %c0_12 = arith.constant 0 : index
    %c0_13 = arith.constant 0 : index
    %12 = vector.load %arg0[%c0_12, %c0_13] : memref<32x32xf32, #tpu.memory_space<vmem>>, vector<32x32xf32>
    %cst_14 = arith.constant dense<0.000000e+00> : vector<32x32xf32>
    %13 = tpu.matmul %12, %11, %cst_14 {dimension_numbers = #tpu.dot_dimension_numbers<[1], [0], [0], [1], [0, 0, 1, 1], [], []>} : vector<32x32xf32>, vector<32x32xf32>, vector<32x32xf32> -> vector<32x32xf32>
    %c0_15 = arith.constant 0 : index
    %c0_16 = arith.constant 0 : index
    %14 = vector.load %arg5[%c0_15, %c0_16] : memref<1x32xf32, #tpu.memory_space<vmem>>, vector<1x32xf32>
    %15 = vector.broadcast %14 : vector<1x32xf32> to vector<32x32xf32>
    %16 = arith.addf %13, %15 : vector<32x32xf32>
    %cst_17 = arith.constant 0.000000e+00 : f32
    %17 = vector.broadcast %cst_17 : f32 to vector<32x32xf32>
    %18 = arith.maximumf %16, %17 : vector<32x32xf32>
    %c0_18 = arith.constant 0 : index
    %c0_19 = arith.constant 0 : index
    %19 = vector.load %arg6[%c0_18, %c0_19] : memref<4x32xf32, #tpu.memory_space<vmem>>, vector<4x32xf32>
    %cst_20 = arith.constant dense<0.000000e+00> : vector<4x32xf32>
    %20 = tpu.matmul %19, %18, %cst_20 {dimension_numbers = #tpu.dot_dimension_numbers<[1], [0], [0], [1], [0, 0, 1, 1], [], []>} : vector<4x32xf32>, vector<32x32xf32>, vector<4x32xf32> -> vector<4x32xf32>
    %c0_21 = arith.constant 0 : index
    %c0_22 = arith.constant 0 : index
    %c0_23 = arith.constant 0 : index
    %21 = vector.load %arg7[%c0_21, %c0_22, %c0_23] : memref<3x32x16xf32, #tpu.memory_space<vmem>>, vector<1x32x16xf32>
    %22 = vector.shape_cast %21 : vector<1x32x16xf32> to vector<32x16xf32>
    %cst_24 = arith.constant dense<0.000000e+00> : vector<4x16xf32>
    %23 = tpu.matmul %20, %22, %cst_24 {dimension_numbers = #tpu.dot_dimension_numbers<[1], [0], [0], [1], [0, 0, 1, 1], [], []>} : vector<4x32xf32>, vector<32x16xf32>, vector<4x16xf32> -> vector<4x16xf32>
    %c0_25 = arith.constant 0 : index
    %c0_26 = arith.constant 0 : index
    %c0_27 = arith.constant 0 : index
    %24 = vector.load %arg8[%c0_25, %c0_26, %c0_27] : memref<3x1x16xf32, #tpu.memory_space<vmem>>, vector<1x1x16xf32>
    %25 = vector.shape_cast %24 : vector<1x1x16xf32> to vector<1x16xf32>
    %26 = vector.broadcast %25 : vector<1x16xf32> to vector<4x16xf32>
    %27 = arith.addf %23, %26 : vector<4x16xf32>
    %cst_28 = arith.constant 0.000000e+00 : f32
    %28 = vector.broadcast %cst_28 : f32 to vector<4x16xf32>
    %29 = arith.maximumf %27, %28 : vector<4x16xf32>
    %c0_29 = arith.constant 0 : index
    %c0_30 = arith.constant 0 : index
    %c0_31 = arith.constant 0 : index
    %30 = vector.load %arg9[%c0_29, %c0_30, %c0_31] : memref<3x16x2xf32, #tpu.memory_space<vmem>>, vector<1x16x2xf32>
    %31 = vector.shape_cast %30 : vector<1x16x2xf32> to vector<16x2xf32>
    %cst_32 = arith.constant dense<0.000000e+00> : vector<4x2xf32>
    %32 = tpu.matmul %29, %31, %cst_32 {dimension_numbers = #tpu.dot_dimension_numbers<[1], [0], [0], [1], [0, 0, 1, 1], [], []>} : vector<4x16xf32>, vector<16x2xf32>, vector<4x2xf32> -> vector<4x2xf32>
    %c0_33 = arith.constant 0 : index
    %c0_34 = arith.constant 0 : index
    %c0_35 = arith.constant 0 : index
    %33 = vector.load %arg10[%c0_33, %c0_34, %c0_35] : memref<3x1x2xf32, #tpu.memory_space<vmem>>, vector<1x1x2xf32>
    %34 = vector.shape_cast %33 : vector<1x1x2xf32> to vector<1x2xf32>
    %35 = vector.broadcast %34 : vector<1x2xf32> to vector<4x2xf32>
    %36 = arith.addf %32, %35 : vector<4x2xf32>
    %c1 = arith.constant 1 : index
    %c0_36 = arith.constant 0 : index
    %c0_37 = arith.constant 0 : index
    %37 = vector.load %arg7[%c1, %c0_36, %c0_37] : memref<3x32x16xf32, #tpu.memory_space<vmem>>, vector<1x32x16xf32>
    %38 = vector.shape_cast %37 : vector<1x32x16xf32> to vector<32x16xf32>
    %cst_38 = arith.constant dense<0.000000e+00> : vector<4x16xf32>
    %39 = tpu.matmul %20, %38, %cst_38 {dimension_numbers = #tpu.dot_dimension_numbers<[1], [0], [0], [1], [0, 0, 1, 1], [], []>} : vector<4x32xf32>, vector<32x16xf32>, vector<4x16xf32> -> vector<4x16xf32>
    %c1_39 = arith.constant 1 : index
    %c0_40 = arith.constant 0 : index
    %c0_41 = arith.constant 0 : index
    %40 = vector.load %arg8[%c1_39, %c0_40, %c0_41] : memref<3x1x16xf32, #tpu.memory_space<vmem>>, vector<1x1x16xf32>
    %41 = vector.shape_cast %40 : vector<1x1x16xf32> to vector<1x16xf32>
    %42 = vector.broadcast %41 : vector<1x16xf32> to vector<4x16xf32>
    %43 = arith.addf %39, %42 : vector<4x16xf32>
    %cst_42 = arith.constant 0.000000e+00 : f32
    %44 = vector.broadcast %cst_42 : f32 to vector<4x16xf32>
    %45 = arith.maximumf %43, %44 : vector<4x16xf32>
    %c1_43 = arith.constant 1 : index
    %c0_44 = arith.constant 0 : index
    %c0_45 = arith.constant 0 : index
    %46 = vector.load %arg9[%c1_43, %c0_44, %c0_45] : memref<3x16x2xf32, #tpu.memory_space<vmem>>, vector<1x16x2xf32>
    %47 = vector.shape_cast %46 : vector<1x16x2xf32> to vector<16x2xf32>
    %cst_46 = arith.constant dense<0.000000e+00> : vector<4x2xf32>
    %48 = tpu.matmul %45, %47, %cst_46 {dimension_numbers = #tpu.dot_dimension_numbers<[1], [0], [0], [1], [0, 0, 1, 1], [], []>} : vector<4x16xf32>, vector<16x2xf32>, vector<4x2xf32> -> vector<4x2xf32>
    %c1_47 = arith.constant 1 : index
    %c0_48 = arith.constant 0 : index
    %c0_49 = arith.constant 0 : index
    %49 = vector.load %arg10[%c1_47, %c0_48, %c0_49] : memref<3x1x2xf32, #tpu.memory_space<vmem>>, vector<1x1x2xf32>
    %50 = vector.shape_cast %49 : vector<1x1x2xf32> to vector<1x2xf32>
    %51 = vector.broadcast %50 : vector<1x2xf32> to vector<4x2xf32>
    %52 = arith.addf %48, %51 : vector<4x2xf32>
    %c2 = arith.constant 2 : index
    %c0_50 = arith.constant 0 : index
    %c0_51 = arith.constant 0 : index
    %53 = vector.load %arg7[%c2, %c0_50, %c0_51] : memref<3x32x16xf32, #tpu.memory_space<vmem>>, vector<1x32x16xf32>
    %54 = vector.shape_cast %53 : vector<1x32x16xf32> to vector<32x16xf32>
    %cst_52 = arith.constant dense<0.000000e+00> : vector<4x16xf32>
    %55 = tpu.matmul %20, %54, %cst_52 {dimension_numbers = #tpu.dot_dimension_numbers<[1], [0], [0], [1], [0, 0, 1, 1], [], []>} : vector<4x32xf32>, vector<32x16xf32>, vector<4x16xf32> -> vector<4x16xf32>
    %c2_53 = arith.constant 2 : index
    %c0_54 = arith.constant 0 : index
    %c0_55 = arith.constant 0 : index
    %56 = vector.load %arg8[%c2_53, %c0_54, %c0_55] : memref<3x1x16xf32, #tpu.memory_space<vmem>>, vector<1x1x16xf32>
    %57 = vector.shape_cast %56 : vector<1x1x16xf32> to vector<1x16xf32>
    %58 = vector.broadcast %57 : vector<1x16xf32> to vector<4x16xf32>
    %59 = arith.addf %55, %58 : vector<4x16xf32>
    %cst_56 = arith.constant 0.000000e+00 : f32
    %60 = vector.broadcast %cst_56 : f32 to vector<4x16xf32>
    %61 = arith.maximumf %59, %60 : vector<4x16xf32>
    %c2_57 = arith.constant 2 : index
    %c0_58 = arith.constant 0 : index
    %c0_59 = arith.constant 0 : index
    %62 = vector.load %arg9[%c2_57, %c0_58, %c0_59] : memref<3x16x2xf32, #tpu.memory_space<vmem>>, vector<1x16x2xf32>
    %63 = vector.shape_cast %62 : vector<1x16x2xf32> to vector<16x2xf32>
    %cst_60 = arith.constant dense<0.000000e+00> : vector<4x2xf32>
    %64 = tpu.matmul %61, %63, %cst_60 {dimension_numbers = #tpu.dot_dimension_numbers<[1], [0], [0], [1], [0, 0, 1, 1], [], []>} : vector<4x16xf32>, vector<16x2xf32>, vector<4x2xf32> -> vector<4x2xf32>
    %c2_61 = arith.constant 2 : index
    %c0_62 = arith.constant 0 : index
    %c0_63 = arith.constant 0 : index
    %65 = vector.load %arg10[%c2_61, %c0_62, %c0_63] : memref<3x1x2xf32, #tpu.memory_space<vmem>>, vector<1x1x2xf32>
    %66 = vector.shape_cast %65 : vector<1x1x2xf32> to vector<1x2xf32>
    %67 = vector.broadcast %66 : vector<1x2xf32> to vector<4x2xf32>
    %68 = arith.addf %64, %67 : vector<4x2xf32>
    %69 = tpu.concatenate %36, %52, %68 in 1 : vector<4x2xf32>, vector<4x2xf32>, vector<4x2xf32> -> vector<4x6xf32>
    %c0_64 = arith.constant 0 : index
    %c0_65 = arith.constant 0 : index
    %70 = vector.load %arg11[%c0_64, %c0_65] : memref<4x6xf32, #tpu.memory_space<vmem>>, vector<4x6xf32>
    tpu.vector_store %arg11[%c0_64, %c0_65], %69 {strides = array<i32>} : memref<4x6xf32, #tpu.memory_space<vmem>>, vector<4x6xf32>,
    return
  }
}

</mosaic_0001>

<llo_original>
// kernel: tpu_custom_call.1
$region0: #{tpu_custom_call.1}
  #allocation0 [shape = 'u32[]', space=smem, size = 0x4, offset = 0x4, fixed_abs, tag = 'smem constant byte address 0x4 - core index']
  #allocation1 [shape = 'u32[144,128]{1,0:T(1,128)}', space=vmem, size = 0x12000, scoped, tag = 'internal scratch']
  %s0 = inlined_call_operand.vmem [shape: f32[32,32], index: 0, kind: input, shape index: {}]
  %s1 = inlined_call_operand.vmem [shape: f32[32,16], index: 1, kind: input, shape index: {}]
  %s2 = inlined_call_operand.vmem [shape: f32[16,32], index: 2, kind: input, shape index: {}]
  %s3 = inlined_call_operand.vmem [shape: f32[1,32], index: 3, kind: input, shape index: {}]
  %s4 = inlined_call_operand.vmem [shape: f32[32,32], index: 4, kind: input, shape index: {}]
  %s5 = inlined_call_operand.vmem [shape: f32[1,32], index: 5, kind: input, shape index: {}]
  %s6 = inlined_call_operand.vmem [shape: f32[4,32], index: 6, kind: input, shape index: {}]
  %s7 = inlined_call_operand.vmem [shape: f32[3,32,16], index: 7, kind: input, shape index: {}]
  %s8 = inlined_call_operand.vmem [shape: f32[3,1,16], index: 8, kind: input, shape index: {}]
  %s9 = inlined_call_operand.vmem [shape: f32[3,16,2], index: 9, kind: input, shape index: {}]
  %s10 = inlined_call_operand.vmem [shape: f32[3,1,2], index: 10, kind: input, shape index: {}]
  %s11 = inlined_call_operand.hbm [shape: f32[4,6], index: 11, kind: output, shape index: {}]
  %s12 = sld [smem:[#allocation0]]
  $region54: #{tpu_custom_call.1} parent=0
    _
  %s14 = ssub.s32 1, %s12
  %s15 = scalar_select 0, %s14, %s12
  $region1: #{tpu_custom_call.1} parent=0
    #allocation2 [shape = 'u8[2048]{0}', space=vmem, size = 0x800, scoped, tag = 'output window, operand 0, single buffered']
    #allocation3 [shape = 's32[1]{0}', space=sflag, size = 0x4, scoped, tag = 'scoped memory for tpu_custom_call.1']
    %16 = vsyncpa [#allocation3], 0
    // Predicated region
    $region2: #{tpu_custom_call.1} parent=1 // pred_check
      _
    $region3: #{tpu_custom_call.1} parent=1 // pred_check_branch
      %18 = sbr.rel (0) target = $region5
    $region4: #{tpu_custom_call.1} parent=1 // pred_region
      _
    $region5: #{tpu_custom_call.1} parent=1 // pred_fallthru
      _
    // Predicated region
    $region6: #{tpu_custom_call.1} parent=1 // pred_check
      _
    $region7: #{tpu_custom_call.1} parent=1 // pred_check_branch
      %20 = sbr.rel (0) target = $region9
    $region8: #{tpu_custom_call.1} parent=1 // pred_region
      _
    $region9: #{tpu_custom_call.1} parent=1 // pred_fallthru
      _
    // Predicated region
    $region10: #{tpu_custom_call.1} parent=1 // pred_check
      _
    $region11: #{tpu_custom_call.1} parent=1 // pred_check_branch
      %22 = sbr.rel (0) target = $region13
    $region12: #{tpu_custom_call.1} parent=1 // pred_region
      _
    $region13: #{tpu_custom_call.1} parent=1 // pred_fallthru
      _
    // Predicated region
    $region14: #{tpu_custom_call.1} parent=1 // pred_check
      _
    $region15: #{tpu_custom_call.1} parent=1 // pred_check_branch
      %24 = sbr.rel (0) target = $region17
    $region16: #{tpu_custom_call.1} parent=1 // pred_region
      _
    $region17: #{tpu_custom_call.1} parent=1 // pred_fallthru
      _
    // Predicated region
    $region18: #{tpu_custom_call.1} parent=1 // pred_check
      _
    $region19: #{tpu_custom_call.1} parent=1 // pred_check_branch
      %26 = sbr.rel (0) target = $region21
    $region20: #{tpu_custom_call.1} parent=1 // pred_region
      _
    $region21: #{tpu_custom_call.1} parent=1 // pred_fallthru
      _
    // Predicated region
    $region22: #{tpu_custom_call.1} parent=1 // pred_check
      _
    $region23: #{tpu_custom_call.1} parent=1 // pred_check_branch
      %28 = sbr.rel (0) target = $region25
    $region24: #{tpu_custom_call.1} parent=1 // pred_region
      _
    $region25: #{tpu_custom_call.1} parent=1 // pred_fallthru
      _
    // Predicated region
    $region26: #{tpu_custom_call.1} parent=1 // pred_check
      _
    $region27: #{tpu_custom_call.1} parent=1 // pred_check_branch
      %30 = sbr.rel (0) target = $region29
    $region28: #{tpu_custom_call.1} parent=1 // pred_region
      _
    $region29: #{tpu_custom_call.1} parent=1 // pred_fallthru
      _
    // Predicated region
    $region30: #{tpu_custom_call.1} parent=1 // pred_check
      _
    $region31: #{tpu_custom_call.1} parent=1 // pred_check_branch
      %32 = sbr.rel (0) target = $region33
    $region32: #{tpu_custom_call.1} parent=1 // pred_region
      _
    $region33: #{tpu_custom_call.1} parent=1 // pred_fallthru
      _
    // Predicated region
    $region34: #{tpu_custom_call.1} parent=1 // pred_check
      _
    $region35: #{tpu_custom_call.1} parent=1 // pred_check_branch
      %34 = sbr.rel (0) target = $region37
    $region36: #{tpu_custom_call.1} parent=1 // pred_region
      _
    $region37: #{tpu_custom_call.1} parent=1 // pred_fallthru
      _
    // Predicated region
    $region38: #{tpu_custom_call.1} parent=1 // pred_check
      _
    $region39: #{tpu_custom_call.1} parent=1 // pred_check_branch
      %36 = sbr.rel (0) target = $region41
    $region40: #{tpu_custom_call.1} parent=1 // pred_region
      _
    $region41: #{tpu_custom_call.1} parent=1 // pred_fallthru
      _
    // Predicated region
    $region42: #{tpu_custom_call.1} parent=1 // pred_check
      _
    $region43: #{tpu_custom_call.1} parent=1 // pred_check_branch
      %38 = sbr.rel (0) target = $region45
    $region44: #{tpu_custom_call.1} parent=1 // pred_region
      _
    $region45: #{tpu_custom_call.1} parent=1 // pred_fallthru
      _
    %v39 = vld [vmem:[%s1] sm:$0xff]
    %v40 = vld [vmem:[%s1 + $0x8] sm:$0xff]
    %v41 = vld [vmem:[%s1 + $0x10] sm:$0xff]
    %v42 = vld [vmem:[%s1 + $0x18] sm:$0xff]
    %v43 = vld [vmem:[%s2] sm:$0xff]
    %v44 = vld [vmem:[%s2 + $0x8] sm:$0xff]
    %vm45 = vcmask 130048
    %v47 = vsel %vm45, %v39, 0
    %v50 = vsel %vm45, %v40, 0
    %v53 = vsel %vm45, %v41, 0
    %v56 = vsel %vm45, %v42, 0
    %58 = vmatprep.subr.mxu0 0.0
    %59 = vmatpush1.msra.mxu0 0.0
    %60 = vmatprep.subr.mxu0 0.0
    %61 = vmatpush1.msra.mxu0 0.0
    %62 = vmatprep.subr.mxu0 0.0
    %63 = vmatpush1.msra.mxu0 0.0
    %64 = vmatprep.subr.mxu0 0.0
    %65 = vmatpush1.msra.mxu0 0.0
    %66 = vmatprep.subr.mxu0 0.0
    %67 = vmatpush1.msra.mxu0 0.0
    %68 = vmatprep.subr.mxu0 0.0
    %69 = vmatpush1.msra.mxu0 0.0
    %70 = vmatprep.subr.mxu0 0.0
    %71 = vmatpush1.msra.mxu0 0.0
    %72 = vmatprep.subr.mxu0 0.0
    %73 = vmatpush1.msra.mxu0 0.0
    %74 = vmatprep.subr.mxu0 0.0
    %75 = vmatpush1.msra.mxu0 0.0
    %76 = vmatprep.subr.mxu0 0.0
    %77 = vmatpush1.msra.mxu0 0.0
    %78 = vmatprep.subr.mxu0 0.0
    %79 = vmatpush1.msra.mxu0 0.0
    %80 = vmatprep.subr.mxu0 0.0
    %81 = vmatpush1.msra.mxu0 0.0
    %82 = vmatprep.subr.mxu0 0.0
    %83 = vmatpush1.msra.mxu0 0.0
    %84 = vmatprep.subr.mxu0 0.0
    %85 = vmatpush1.msra.mxu0 0.0
    %86 = vmatprep.subr.mxu0 0.0
    %87 = vmatpush1.msra.mxu0 %v44
    %88 = vmatprep.subr.mxu0 0.0
    %89 = vmatpush1.msra.mxu0 %v43
    %90 = vmatprep.subr.mxu0 0.0
    %91 = vmatpush2.msra.mxu0 0.0
    %92 = vmatprep.subr.mxu0 0.0
    %93 = vmatpush2.msra.mxu0 0.0
    %94 = vmatprep.subr.mxu0 0.0
    %95 = vmatpush2.msra.mxu0 0.0
    %96 = vmatprep.subr.mxu0 0.0
    %97 = vmatpush2.msra.mxu0 0.0
    %98 = vmatprep.subr.mxu0 0.0
    %99 = vmatpush2.msra.mxu0 0.0
    %100 = vmatprep.subr.mxu0 0.0
    %101 = vmatpush2.msra.mxu0 0.0
    %102 = vmatprep.subr.mxu0 0.0
    %103 = vmatpush2.msra.mxu0 0.0
    %104 = vmatprep.subr.mxu0 0.0
    %105 = vmatpush2.msra.mxu0 0.0
    %106 = vmatprep.subr.mxu0 0.0
    %107 = vmatpush2.msra.mxu0 0.0
    %108 = vmatprep.subr.mxu0 0.0
    %109 = vmatpush2.msra.mxu0 0.0
    %110 = vmatprep.subr.mxu0 0.0
    %111 = vmatpush2.msra.mxu0 0.0
    %112 = vmatprep.subr.mxu0 0.0
    %113 = vmatpush2.msra.mxu0 0.0
    %114 = vmatprep.subr.mxu0 0.0
    %115 = vmatpush2.msra.mxu0 0.0
    %116 = vmatprep.subr.mxu0 0.0
    %117 = vmatpush2.msra.mxu0 0.0
    %118 = vmatprep.subr.mxu0 0.0
    %119 = vmatpush2.msra.mxu0 0.0
    %120 = vmatprep.subr.mxu0 0.0
    %121 = vmatpush2.msra.mxu0 0.0
    %122 = vmatprep.mubr.f32.mxu0 0.0
    %123 = vmatmul.mubr.f32.gmra.mxu0 %v47
    %v124 = vpop.f32.mrf.mxu0
    %v125 = vadd.f32 0.0, %v124
    %v126 = vpop.f32.mrf.mxu0
    %127 = vmatprep.mubr.f32.mxu0 0.0
    %128 = vmatmul.mubr.f32.gmra.mxu0 %v50
    %v129 = vpop.f32.mrf.mxu0
    %v130 = vadd.f32 0.0, %v129
    %v131 = vpop.f32.mrf.mxu0
    %132 = vmatprep.mubr.f32.mxu0 0.0
    %133 = vmatmul.mubr.f32.gmra.mxu0 %v53
    %v134 = vpop.f32.mrf.mxu0
    %v135 = vadd.f32 0.0, %v134
    %v136 = vpop.f32.mrf.mxu0
    %137 = vmatprep.mubr.f32.mxu0 0.0
    %138 = vmatmul.mubr.f32.gmra.mxu0 %v56
    %v139 = vpop.f32.mrf.mxu0
    %v140 = vadd.f32 0.0, %v139
    %v141 = vpop.f32.mrf.mxu0
    %142 = vdwg.mxu0
    %v143 = vld [vmem:[%s0] sm:$0xff]
    %v144 = vld [vmem:[%s0 + $0x8] sm:$0xff]
    %v145 = vld [vmem:[%s0 + $0x10] sm:$0xff]
    %v146 = vld [vmem:[%s0 + $0x18] sm:$0xff]
    %v147 = vld [vmem:[%s3] sm:$0x1]
    %v149 = vlaneseq
    %v150 = vshrl.u32 %v149, 7
    %v151 = vsub.s32 0, %v150
    %v152 = vrot.slane %v147, %v151
    %vm154 = vcmask 261120
    %v156 = vsel %vm154, %v143, 0
    %v159 = vsel %vm154, %v144, 0
    %v162 = vsel %vm154, %v145, 0
    %v165 = vsel %vm154, %v146, 0
    %167 = vmatprep.subr.mxu0 0.0
    %168 = vmatpush1.msra.mxu0 0.0
    %169 = vmatprep.subr.mxu0 0.0
    %170 = vmatpush1.msra.mxu0 0.0
    %171 = vmatprep.subr.mxu0 0.0
    %172 = vmatpush1.msra.mxu0 0.0
    %173 = vmatprep.subr.mxu0 0.0
    %174 = vmatpush1.msra.mxu0 0.0
    %175 = vmatprep.subr.mxu0 0.0
    %176 = vmatpush1.msra.mxu0 0.0
    %177 = vmatprep.subr.mxu0 0.0
    %178 = vmatpush1.msra.mxu0 0.0
    %179 = vmatprep.subr.mxu0 0.0
    %180 = vmatpush1.msra.mxu0 0.0
    %181 = vmatprep.subr.mxu0 0.0
    %182 = vmatpush1.msra.mxu0 0.0
    %183 = vmatprep.subr.mxu0 0.0
    %184 = vmatpush1.msra.mxu0 0.0
    %185 = vmatprep.subr.mxu0 0.0
    %186 = vmatpush1.msra.mxu0 0.0
    %187 = vmatprep.subr.mxu0 0.0
    %188 = vmatpush1.msra.mxu0 0.0
    %189 = vmatprep.subr.mxu0 0.0
    %190 = vmatpush1.msra.mxu0 0.0
    %191 = vmatprep.subr.mxu0 0.0
    %192 = vmatpush1.msra.mxu0 %v140
    %193 = vmatprep.subr.mxu0 0.0
    %194 = vmatpush1.msra.mxu0 %v135
    %195 = vmatprep.subr.mxu0 0.0
    %196 = vmatpush1.msra.mxu0 %v130
    %197 = vmatprep.subr.mxu0 0.0
    %198 = vmatpush1.msra.mxu0 %v125
    %199 = vmatprep.subr.mxu0 0.0
    %200 = vmatpush2.msra.mxu0 0.0
    %201 = vmatprep.subr.mxu0 0.0
    %202 = vmatpush2.msra.mxu0 0.0
    %203 = vmatprep.subr.mxu0 0.0
    %204 = vmatpush2.msra.mxu0 0.0
    %205 = vmatprep.subr.mxu0 0.0
    %206 = vmatpush2.msra.mxu0 0.0
    %207 = vmatprep.subr.mxu0 0.0
    %208 = vmatpush2.msra.mxu0 0.0
    %209 = vmatprep.subr.mxu0 0.0
    %210 = vmatpush2.msra.mxu0 0.0
    %211 = vmatprep.subr.mxu0 0.0
    %212 = vmatpush2.msra.mxu0 0.0
    %213 = vmatprep.subr.mxu0 0.0
    %214 = vmatpush2.msra.mxu0 0.0
    %215 = vmatprep.subr.mxu0 0.0
    %216 = vmatpush2.msra.mxu0 0.0
    %217 = vmatprep.subr.mxu0 0.0
    %218 = vmatpush2.msra.mxu0 0.0
    %219 = vmatprep.subr.mxu0 0.0
    %220 = vmatpush2.msra.mxu0 0.0
    %221 = vmatprep.subr.mxu0 0.0
    %222 = vmatpush2.msra.mxu0 0.0
    %223 = vmatprep.subr.mxu0 0.0
    %224 = vmatpush2.msra.mxu0 0.0
    %225 = vmatprep.subr.mxu0 0.0
    %226 = vmatpush2.msra.mxu0 0.0
    %227 = vmatprep.subr.mxu0 0.0
    %228 = vmatpush2.msra.mxu0 0.0
    %229 = vmatprep.subr.mxu0 0.0
    %230 = vmatpush2.msra.mxu0 0.0
    %231 = vmatprep.mubr.f32.mxu0 0.0
    %232 = vmatmul.mubr.f32.gmra.mxu0 %v156
    %v233 = vpop.f32.mrf.mxu0
    %v234 = vadd.f32 %v152, %v233
    %v235 = vpop.f32.mrf.mxu0
    %236 = vmatprep.mubr.f32.mxu0 0.0
    %237 = vmatmul.mubr.f32.gmra.mxu0 %v159
    %v238 = vpop.f32.mrf.mxu0
    %v239 = vadd.f32 %v152, %v238
    %v240 = vpop.f32.mrf.mxu0
    %241 = vmatprep.mubr.f32.mxu0 0.0
    %242 = vmatmul.mubr.f32.gmra.mxu0 %v162
    %v243 = vpop.f32.mrf.mxu0
    %v244 = vadd.f32 %v152, %v243
    %v245 = vpop.f32.mrf.mxu0
    %246 = vmatprep.mubr.f32.mxu0 0.0
    %247 = vmatmul.mubr.f32.gmra.mxu0 %v165
    %v248 = vpop.f32.mrf.mxu0
    %v249 = vadd.f32 %v152, %v248
    %v250 = vpop.f32.mrf.mxu0
    %251 = vdwg.mxu0
    %v252 = vmax.f32 %v234, 0.0
    %v253 = vmax.f32 %v239, 0.0
    %v254 = vmax.f32 %v244, 0.0
    %v255 = vmax.f32 %v249, 0.0
    %v256 = vld [vmem:[%s4] sm:$0xff]
    %v257 = vld [vmem:[%s4 + $0x8] sm:$0xff]
    %v258 = vld [vmem:[%s4 + $0x10] sm:$0xff]
    %v259 = vld [vmem:[%s4 + $0x18] sm:$0xff]
    %v261 = vsel %vm154, %v252, 0
    %v264 = vsel %vm154, %v253, 0
    %v267 = vsel %vm154, %v254, 0
    %v270 = vsel %vm154, %v255, 0
    %272 = vmatprep.subr.mxu0 0.0
    %273 = vmatpush1.msra.mxu0 0.0
    %274 = vmatprep.subr.mxu0 0.0
    %275 = vmatpush1.msra.mxu0 0.0
    %276 = vmatprep.subr.mxu0 0.0
    %277 = vmatpush1.msra.mxu0 0.0
    %278 = vmatprep.subr.mxu0 0.0
    %279 = vmatpush1.msra.mxu0 0.0
    %280 = vmatprep.subr.mxu0 0.0
    %281 = vmatpush1.msra.mxu0 0.0
    %282 = vmatprep.subr.mxu0 0.0
    %283 = vmatpush1.msra.mxu0 0.0
    %284 = vmatprep.subr.mxu0 0.0
    %285 = vmatpush1.msra.mxu0 0.0
    %286 = vmatprep.subr.mxu0 0.0
    %287 = vmatpush1.msra.mxu0 0.0
    %288 = vmatprep.subr.mxu0 0.0
    %289 = vmatpush1.msra.mxu0 0.0
    %290 = vmatprep.subr.mxu0 0.0
    %291 = vmatpush1.msra.mxu0 0.0
    %292 = vmatprep.subr.mxu0 0.0
    %293 = vmatpush1.msra.mxu0 0.0
    %294 = vmatprep.subr.mxu0 0.0
    %295 = vmatpush1.msra.mxu0 0.0
    %296 = vmatprep.subr.mxu0 0.0
    %297 = vmatpush1.msra.mxu0 %v259
    %298 = vmatprep.subr.mxu0 0.0
    %299 = vmatpush1.msra.mxu0 %v258
    %300 = vmatprep.subr.mxu0 0.0
    %301 = vmatpush1.msra.mxu0 %v257
    %302 = vmatprep.subr.mxu0 0.0
    %303 = vmatpush1.msra.mxu0 %v256
    %304 = vmatprep.subr.mxu0 0.0
    %305 = vmatpush2.msra.mxu0 0.0
    %306 = vmatprep.subr.mxu0 0.0
    %307 = vmatpush2.msra.mxu0 0.0
    %308 = vmatprep.subr.mxu0 0.0
    %309 = vmatpush2.msra.mxu0 0.0
    %310 = vmatprep.subr.mxu0 0.0
    %311 = vmatpush2.msra.mxu0 0.0
    %312 = vmatprep.subr.mxu0 0.0
    %313 = vmatpush2.msra.mxu0 0.0
    %314 = vmatprep.subr.mxu0 0.0
    %315 = vmatpush2.msra.mxu0 0.0
    %316 = vmatprep.subr.mxu0 0.0
    %317 = vmatpush2.msra.mxu0 0.0
    %318 = vmatprep.subr.mxu0 0.0
    %319 = vmatpush2.msra.mxu0 0.0
    %320 = vmatprep.subr.mxu0 0.0
    %321 = vmatpush2.msra.mxu0 0.0
    %322 = vmatprep.subr.mxu0 0.0
    %323 = vmatpush2.msra.mxu0 0.0
    %324 = vmatprep.subr.mxu0 0.0
    %325 = vmatpush2.msra.mxu0 0.0
    %326 = vmatprep.subr.mxu0 0.0
    %327 = vmatpush2.msra.mxu0 0.0
    %328 = vmatprep.subr.mxu0 0.0
    %329 = vmatpush2.msra.mxu0 0.0
    %330 = vmatprep.subr.mxu0 0.0
    %331 = vmatpush2.msra.mxu0 0.0
    %332 = vmatprep.subr.mxu0 0.0
    %333 = vmatpush2.msra.mxu0 0.0
    %334 = vmatprep.subr.mxu0 0.0
    %335 = vmatpush2.msra.mxu0 0.0
    %336 = vmatprep.mubr.f32.mxu0 0.0
    %337 = vmatmul.mubr.f32.gmra.mxu0 %v261
    %v338 = vpop.f32.mrf.mxu0
    %v339 = vadd.f32 0.0, %v338
    %v340 = vpop.f32.mrf.mxu0
    %341 = vmatprep.mubr.f32.mxu0 0.0
    %342 = vmatmul.mubr.f32.gmra.mxu0 %v264
    %v343 = vpop.f32.mrf.mxu0
    %v344 = vadd.f32 0.0, %v343
    %v345 = vpop.f32.mrf.mxu0
    %346 = vmatprep.mubr.f32.mxu0 0.0
    %347 = vmatmul.mubr.f32.gmra.mxu0 %v267
    %v348 = vpop.f32.mrf.mxu0
    %v349 = vadd.f32 0.0, %v348
    %v350 = vpop.f32.mrf.mxu0
    %351 = vmatprep.mubr.f32.mxu0 0.0
    %352 = vmatmul.mubr.f32.gmra.mxu0 %v270
    %v353 = vpop.f32.mrf.mxu0
    %v354 = vadd.f32 0.0, %v353
    %v355 = vpop.f32.mrf.mxu0
    %356 = vdwg.mxu0
    %v357 = vld [vmem:[%s5] sm:$0x1]
    %v359 = vlaneseq
    %v360 = vshrl.u32 %v359, 7
    %v361 = vsub.s32 0, %v360
    %v362 = vrot.slane %v357, %v361
    %364 = vmatprep.subr.mxu0 0.0
    %365 = vmatpush1.msra.mxu0 0.0
    %366 = vmatprep.subr.mxu0 0.0
    %367 = vmatpush1.msra.mxu0 0.0
    %368 = vmatprep.subr.mxu0 0.0
    %369 = vmatpush1.msra.mxu0 0.0
    %370 = vmatprep.subr.mxu0 0.0
    %371 = vmatpush1.msra.mxu0 0.0
    %372 = vmatprep.subr.mxu0 0.0
    %373 = vmatpush1.msra.mxu0 0.0
    %374 = vmatprep.subr.mxu0 0.0
    %375 = vmatpush1.msra.mxu0 0.0
    %376 = vmatprep.subr.mxu0 0.0
    %377 = vmatpush1.msra.mxu0 0.0
    %378 = vmatprep.subr.mxu0 0.0
    %379 = vmatpush1.msra.mxu0 0.0
    %380 = vmatprep.subr.mxu0 0.0
    %381 = vmatpush1.msra.mxu0 0.0
    %382 = vmatprep.subr.mxu0 0.0
    %383 = vmatpush1.msra.mxu0 0.0
    %384 = vmatprep.subr.mxu0 0.0
    %385 = vmatpush1.msra.mxu0 0.0
    %386 = vmatprep.subr.mxu0 0.0
    %387 = vmatpush1.msra.mxu0 0.0
    %388 = vmatprep.subr.mxu0 0.0
    %389 = vmatpush1.msra.mxu0 %v354
    %390 = vmatprep.subr.mxu0 0.0
    %391 = vmatpush1.msra.mxu0 %v349
    %392 = vmatprep.subr.mxu0 0.0
    %393 = vmatpush1.msra.mxu0 %v344
    %394 = vmatprep.subr.mxu0 0.0
    %395 = vmatpush1.msra.mxu0 %v339
    %396 = vmatprep.subr.mxu0 0.0
    %397 = vmatpush2.msra.mxu0 0.0
    %398 = vmatprep.subr.mxu0 0.0
    %399 = vmatpush2.msra.mxu0 0.0
    %400 = vmatprep.subr.mxu0 0.0
    %401 = vmatpush2.msra.mxu0 0.0
    %402 = vmatprep.subr.mxu0 0.0
    %403 = vmatpush2.msra.mxu0 0.0
    %404 = vmatprep.subr.mxu0 0.0
    %405 = vmatpush2.msra.mxu0 0.0
    %406 = vmatprep.subr.mxu0 0.0
    %407 = vmatpush2.msra.mxu0 0.0
    %408 = vmatprep.subr.mxu0 0.0
    %409 = vmatpush2.msra.mxu0 0.0
    %410 = vmatprep.subr.mxu0 0.0
    %411 = vmatpush2.msra.mxu0 0.0
    %412 = vmatprep.subr.mxu0 0.0
    %413 = vmatpush2.msra.mxu0 0.0
    %414 = vmatprep.subr.mxu0 0.0
    %415 = vmatpush2.msra.mxu0 0.0
    %416 = vmatprep.subr.mxu0 0.0
    %417 = vmatpush2.msra.mxu0 0.0
    %418 = vmatprep.subr.mxu0 0.0
    %419 = vmatpush2.msra.mxu0 0.0
    %420 = vmatprep.subr.mxu0 0.0
    %421 = vmatpush2.msra.mxu0 0.0
    %422 = vmatprep.subr.mxu0 0.0
    %423 = vmatpush2.msra.mxu0 0.0
    %424 = vmatprep.subr.mxu0 0.0
    %425 = vmatpush2.msra.mxu0 0.0
    %426 = vmatprep.subr.mxu0 0.0
    %427 = vmatpush2.msra.mxu0 0.0
    %428 = vmatprep.mubr.f32.mxu0 0.0
    %429 = vmatmul.mubr.f32.gmra.mxu0 %v156
    %v430 = vpop.f32.mrf.mxu0
    %v431 = vadd.f32 %v362, %v430
    %v432 = vpop.f32.mrf.mxu0
    %433 = vmatprep.mubr.f32.mxu0 0.0
    %434 = vmatmul.mubr.f32.gmra.mxu0 %v159
    %v435 = vpop.f32.mrf.mxu0
    %v436 = vadd.f32 %v362, %v435
    %v437 = vpop.f32.mrf.mxu0
    %438 = vmatprep.mubr.f32.mxu0 0.0
    %439 = vmatmul.mubr.f32.gmra.mxu0 %v162
    %v440 = vpop.f32.mrf.mxu0
    %v441 = vadd.f32 %v362, %v440
    %v442 = vpop.f32.mrf.mxu0
    %443 = vmatprep.mubr.f32.mxu0 0.0
    %444 = vmatmul.mubr.f32.gmra.mxu0 %v165
    %v445 = vpop.f32.mrf.mxu0
    %v446 = vadd.f32 %v362, %v445
    %v447 = vpop.f32.mrf.mxu0
    %448 = vdwg.mxu0
    %v449 = vmax.f32 %v431, 0.0
    %v450 = vmax.f32 %v436, 0.0
    %v451 = vmax.f32 %v441, 0.0
    %v452 = vmax.f32 %v446, 0.0
    %v453 = vld [vmem:[%s6] sm:$0xf]
    %v455 = vsel %vm154, %v453, 0
    %457 = vmatprep.subr.mxu0 0.0
    %458 = vmatpush1.msra.mxu0 0.0
    %459 = vmatprep.subr.mxu0 0.0
    %460 = vmatpush1.msra.mxu0 0.0
    %461 = vmatprep.subr.mxu0 0.0
    %462 = vmatpush1.msra.mxu0 0.0
    %463 = vmatprep.subr.mxu0 0.0
    %464 = vmatpush1.msra.mxu0 0.0
    %465 = vmatprep.subr.mxu0 0.0
    %466 = vmatpush1.msra.mxu0 0.0
    %467 = vmatprep.subr.mxu0 0.0
    %468 = vmatpush1.msra.mxu0 0.0
    %469 = vmatprep.subr.mxu0 0.0
    %470 = vmatpush1.msra.mxu0 0.0
    %471 = vmatprep.subr.mxu0 0.0
    %472 = vmatpush1.msra.mxu0 0.0
    %473 = vmatprep.subr.mxu0 0.0
    %474 = vmatpush1.msra.mxu0 0.0
    %475 = vmatprep.subr.mxu0 0.0
    %476 = vmatpush1.msra.mxu0 0.0
    %477 = vmatprep.subr.mxu0 0.0
    %478 = vmatpush1.msra.mxu0 0.0
    %479 = vmatprep.subr.mxu0 0.0
    %480 = vmatpush1.msra.mxu0 0.0
    %481 = vmatprep.subr.mxu0 0.0
    %482 = vmatpush1.msra.mxu0 %v452
    %483 = vmatprep.subr.mxu0 0.0
    %484 = vmatpush1.msra.mxu0 %v451
    %485 = vmatprep.subr.mxu0 0.0
    %486 = vmatpush1.msra.mxu0 %v450
    %487 = vmatprep.subr.mxu0 0.0
    %488 = vmatpush1.msra.mxu0 %v449
    %489 = vmatprep.subr.mxu0 0.0
    %490 = vmatpush2.msra.mxu0 0.0
    %491 = vmatprep.subr.mxu0 0.0
    %492 = vmatpush2.msra.mxu0 0.0
    %493 = vmatprep.subr.mxu0 0.0
    %494 = vmatpush2.msra.mxu0 0.0
    %495 = vmatprep.subr.mxu0 0.0
    %496 = vmatpush2.msra.mxu0 0.0
    %497 = vmatprep.subr.mxu0 0.0
    %498 = vmatpush2.msra.mxu0 0.0
    %499 = vmatprep.subr.mxu0 0.0
    %500 = vmatpush2.msra.mxu0 0.0
    %501 = vmatprep.subr.mxu0 0.0
    %502 = vmatpush2.msra.mxu0 0.0
    %503 = vmatprep.subr.mxu0 0.0
    %504 = vmatpush2.msra.mxu0 0.0
    %505 = vmatprep.subr.mxu0 0.0
    %506 = vmatpush2.msra.mxu0 0.0
    %507 = vmatprep.subr.mxu0 0.0
    %508 = vmatpush2.msra.mxu0 0.0
    %509 = vmatprep.subr.mxu0 0.0
    %510 = vmatpush2.msra.mxu0 0.0
    %511 = vmatprep.subr.mxu0 0.0
    %512 = vmatpush2.msra.mxu0 0.0
    %513 = vmatprep.subr.mxu0 0.0
    %514 = vmatpush2.msra.mxu0 0.0
    %515 = vmatprep.subr.mxu0 0.0
    %516 = vmatpush2.msra.mxu0 0.0
    %517 = vmatprep.subr.mxu0 0.0
    %518 = vmatpush2.msra.mxu0 0.0
    %519 = vmatprep.subr.mxu0 0.0
    %520 = vmatpush2.msra.mxu0 0.0
    %521 = vmatprep.mubr.f32.mxu0 0.0
    %522 = vmatmul.mubr.f32.gmra.mxu0 %v455
    %v523 = vpop.f32.mrf.mxu0
    %v524 = vadd.f32 0.0, %v523
    %v525 = vpop.f32.mrf.mxu0
    %526 = vdwg.mxu0
    %v527 = vld [vmem:[%s7] sm:$0xff]
    %v528 = vld [vmem:[%s7 + $0x8] sm:$0xff]
    %v529 = vld [vmem:[%s7 + $0x10] sm:$0xff]
    %v530 = vld [vmem:[%s7 + $0x18] sm:$0xff]
    %v531 = vld [vmem:[%s8] sm:$0x1]
    %v533 = vlaneseq
    %v534 = vshrl.u32 %v533, 7
    %v535 = vsub.s32 0, %v534
    %v536 = vrot.slane %v531, %v535
    %v539 = vsel %vm154, %v524, 0
    %541 = vmatprep.subr.mxu0 0.0
    %542 = vmatpush1.msra.mxu0 0.0
    %543 = vmatprep.subr.mxu0 0.0
    %544 = vmatpush1.msra.mxu0 0.0
    %545 = vmatprep.subr.mxu0 0.0
    %546 = vmatpush1.msra.mxu0 0.0
    %547 = vmatprep.subr.mxu0 0.0
    %548 = vmatpush1.msra.mxu0 0.0
    %549 = vmatprep.subr.mxu0 0.0
    %550 = vmatpush1.msra.mxu0 0.0
    %551 = vmatprep.subr.mxu0 0.0
    %552 = vmatpush1.msra.mxu0 0.0
    %553 = vmatprep.subr.mxu0 0.0
    %554 = vmatpush1.msra.mxu0 0.0
    %555 = vmatprep.subr.mxu0 0.0
    %556 = vmatpush1.msra.mxu0 0.0
    %557 = vmatprep.subr.mxu0 0.0
    %558 = vmatpush1.msra.mxu0 0.0
    %559 = vmatprep.subr.mxu0 0.0
    %560 = vmatpush1.msra.mxu0 0.0
    %561 = vmatprep.subr.mxu0 0.0
    %562 = vmatpush1.msra.mxu0 0.0
    %563 = vmatprep.subr.mxu0 0.0
    %564 = vmatpush1.msra.mxu0 0.0
    %565 = vmatprep.subr.mxu0 0.0
    %566 = vmatpush1.msra.mxu0 %v530
    %567 = vmatprep.subr.mxu0 0.0
    %568 = vmatpush1.msra.mxu0 %v529
    %569 = vmatprep.subr.mxu0 0.0
    %570 = vmatpush1.msra.mxu0 %v528
    %571 = vmatprep.subr.mxu0 0.0
    %572 = vmatpush1.msra.mxu0 %v527
    %573 = vmatprep.subr.mxu0 0.0
    %574 = vmatpush2.msra.mxu0 0.0
    %575 = vmatprep.subr.mxu0 0.0
    %576 = vmatpush2.msra.mxu0 0.0
    %577 = vmatprep.subr.mxu0 0.0
    %578 = vmatpush2.msra.mxu0 0.0
    %579 = vmatprep.subr.mxu0 0.0
    %580 = vmatpush2.msra.mxu0 0.0
    %581 = vmatprep.subr.mxu0 0.0
    %582 = vmatpush2.msra.mxu0 0.0
    %583 = vmatprep.subr.mxu0 0.0
    %584 = vmatpush2.msra.mxu0 0.0
    %585 = vmatprep.subr.mxu0 0.0
    %586 = vmatpush2.msra.mxu0 0.0
    %587 = vmatprep.subr.mxu0 0.0
    %588 = vmatpush2.msra.mxu0 0.0
    %589 = vmatprep.subr.mxu0 0.0
    %590 = vmatpush2.msra.mxu0 0.0
    %591 = vmatprep.subr.mxu0 0.0
    %592 = vmatpush2.msra.mxu0 0.0
    %593 = vmatprep.subr.mxu0 0.0
    %594 = vmatpush2.msra.mxu0 0.0
    %595 = vmatprep.subr.mxu0 0.0
    %596 = vmatpush2.msra.mxu0 0.0
    %597 = vmatprep.subr.mxu0 0.0
    %598 = vmatpush2.msra.mxu0 0.0
    %599 = vmatprep.subr.mxu0 0.0
    %600 = vmatpush2.msra.mxu0 0.0
    %601 = vmatprep.subr.mxu0 0.0
    %602 = vmatpush2.msra.mxu0 0.0
    %603 = vmatprep.subr.mxu0 0.0
    %604 = vmatpush2.msra.mxu0 0.0
    %605 = vmatprep.mubr.f32.mxu0 0.0
    %606 = vmatmul.mubr.f32.gmra.mxu0 %v539
    %v607 = vpop.f32.mrf.mxu0
    %v608 = vadd.f32 %v536, %v607
    %v609 = vpop.f32.mrf.mxu0
    %610 = vdwg.mxu0
    %v611 = vmax.f32 %v608, 0.0
    %v612 = vld [vmem:[%s9] sm:$0xff]
    %v613 = vld [vmem:[%s9 + $0x8] sm:$0xff]
    %v614 = vld [vmem:[%s10] sm:$0x1]
    %v616 = vlaneseq
    %v617 = vshrl.u32 %v616, 7
    %v618 = vsub.s32 0, %v617
    %v619 = vrot.slane %v614, %v618
    %v622 = vsel %vm45, %v611, 0
    %624 = vmatprep.subr.mxu0 0.0
    %625 = vmatpush1.msra.mxu0 0.0
    %626 = vmatprep.subr.mxu0 0.0
    %627 = vmatpush1.msra.mxu0 0.0
    %628 = vmatprep.subr.mxu0 0.0
    %629 = vmatpush1.msra.mxu0 0.0
    %630 = vmatprep.subr.mxu0 0.0
    %631 = vmatpush1.msra.mxu0 0.0
    %632 = vmatprep.subr.mxu0 0.0
    %633 = vmatpush1.msra.mxu0 0.0
    %634 = vmatprep.subr.mxu0 0.0
    %635 = vmatpush1.msra.mxu0 0.0
    %636 = vmatprep.subr.mxu0 0.0
    %637 = vmatpush1.msra.mxu0 0.0
    %638 = vmatprep.subr.mxu0 0.0
    %639 = vmatpush1.msra.mxu0 0.0
    %640 = vmatprep.subr.mxu0 0.0
    %641 = vmatpush1.msra.mxu0 0.0
    %642 = vmatprep.subr.mxu0 0.0
    %643 = vmatpush1.msra.mxu0 0.0
    %644 = vmatprep.subr.mxu0 0.0
    %645 = vmatpush1.msra.mxu0 0.0
    %646 = vmatprep.subr.mxu0 0.0
    %647 = vmatpush1.msra.mxu0 0.0
    %648 = vmatprep.subr.mxu0 0.0
    %649 = vmatpush1.msra.mxu0 0.0
    %650 = vmatprep.subr.mxu0 0.0
    %651 = vmatpush1.msra.mxu0 0.0
    %652 = vmatprep.subr.mxu0 0.0
    %653 = vmatpush1.msra.mxu0 %v613
    %654 = vmatprep.subr.mxu0 0.0
    %655 = vmatpush1.msra.mxu0 %v612
    %656 = vmatprep.subr.mxu0 0.0
    %657 = vmatpush2.msra.mxu0 0.0
    %658 = vmatprep.subr.mxu0 0.0
    %659 = vmatpush2.msra.mxu0 0.0
    %660 = vmatprep.subr.mxu0 0.0
    %661 = vmatpush2.msra.mxu0 0.0
    %662 = vmatprep.subr.mxu0 0.0
    %663 = vmatpush2.msra.mxu0 0.0
    %664 = vmatprep.subr.mxu0 0.0
    %665 = vmatpush2.msra.mxu0 0.0
    %666 = vmatprep.subr.mxu0 0.0
    %667 = vmatpush2.msra.mxu0 0.0
    %668 = vmatprep.subr.mxu0 0.0
    %669 = vmatpush2.msra.mxu0 0.0
    %670 = vmatprep.subr.mxu0 0.0
    %671 = vmatpush2.msra.mxu0 0.0
    %672 = vmatprep.subr.mxu0 0.0
    %673 = vmatpush2.msra.mxu0 0.0
    %674 = vmatprep.subr.mxu0 0.0
    %675 = vmatpush2.msra.mxu0 0.0
    %676 = vmatprep.subr.mxu0 0.0
    %677 = vmatpush2.msra.mxu0 0.0
    %678 = vmatprep.subr.mxu0 0.0
    %679 = vmatpush2.msra.mxu0 0.0
    %680 = vmatprep.subr.mxu0 0.0
    %681 = vmatpush2.msra.mxu0 0.0
    %682 = vmatprep.subr.mxu0 0.0
    %683 = vmatpush2.msra.mxu0 0.0
    %684 = vmatprep.subr.mxu0 0.0
    %685 = vmatpush2.msra.mxu0 0.0
    %686 = vmatprep.subr.mxu0 0.0
    %687 = vmatpush2.msra.mxu0 0.0
    %688 = vmatprep.mubr.f32.mxu0 0.0
    %689 = vmatmul.mubr.f32.gmra.mxu0 %v622
    %v690 = vpop.f32.mrf.mxu0
    %v691 = vadd.f32 %v619, %v690
    %v692 = vpop.f32.mrf.mxu0
    %693 = vdwg.mxu0
    %s694 = scalar_lea.vmem %s7, 32
    %v695 = vld [vmem:[%s694] sm:$0xff]
    %v696 = vld [vmem:[%s694 + $0x8] sm:$0xff]
    %v697 = vld [vmem:[%s694 + $0x10] sm:$0xff]
    %v698 = vld [vmem:[%s694 + $0x18] sm:$0xff]
    %s699 = scalar_lea.vmem %s8, 1
    %v700 = vld [vmem:[%s699] sm:$0x1]
    %v702 = vlaneseq
    %v703 = vshrl.u32 %v702, 7
    %v704 = vsub.s32 0, %v703
    %v705 = vrot.slane %v700, %v704
    %707 = vmatprep.subr.mxu0 0.0
    %708 = vmatpush1.msra.mxu0 0.0
    %709 = vmatprep.subr.mxu0 0.0
    %710 = vmatpush1.msra.mxu0 0.0
    %711 = vmatprep.subr.mxu0 0.0
    %712 = vmatpush1.msra.mxu0 0.0
    %713 = vmatprep.subr.mxu0 0.0
    %714 = vmatpush1.msra.mxu0 0.0
    %715 = vmatprep.subr.mxu0 0.0
    %716 = vmatpush1.msra.mxu0 0.0
    %717 = vmatprep.subr.mxu0 0.0
    %718 = vmatpush1.msra.mxu0 0.0
    %719 = vmatprep.subr.mxu0 0.0
    %720 = vmatpush1.msra.mxu0 0.0
    %721 = vmatprep.subr.mxu0 0.0
    %722 = vmatpush1.msra.mxu0 0.0
    %723 = vmatprep.subr.mxu0 0.0
    %724 = vmatpush1.msra.mxu0 0.0
    %725 = vmatprep.subr.mxu0 0.0
    %726 = vmatpush1.msra.mxu0 0.0
    %727 = vmatprep.subr.mxu0 0.0
    %728 = vmatpush1.msra.mxu0 0.0
    %729 = vmatprep.subr.mxu0 0.0
    %730 = vmatpush1.msra.mxu0 0.0
    %731 = vmatprep.subr.mxu0 0.0
    %732 = vmatpush1.msra.mxu0 %v698
    %733 = vmatprep.subr.mxu0 0.0
    %734 = vmatpush1.msra.mxu0 %v697
    %735 = vmatprep.subr.mxu0 0.0
    %736 = vmatpush1.msra.mxu0 %v696
    %737 = vmatprep.subr.mxu0 0.0
    %738 = vmatpush1.msra.mxu0 %v695
    %739 = vmatprep.subr.mxu0 0.0
    %740 = vmatpush2.msra.mxu0 0.0
    %741 = vmatprep.subr.mxu0 0.0
    %742 = vmatpush2.msra.mxu0 0.0
    %743 = vmatprep.subr.mxu0 0.0
    %744 = vmatpush2.msra.mxu0 0.0
    %745 = vmatprep.subr.mxu0 0.0
    %746 = vmatpush2.msra.mxu0 0.0
    %747 = vmatprep.subr.mxu0 0.0
    %748 = vmatpush2.msra.mxu0 0.0
    %749 = vmatprep.subr.mxu0 0.0
    %750 = vmatpush2.msra.mxu0 0.0
    %751 = vmatprep.subr.mxu0 0.0
    %752 = vmatpush2.msra.mxu0 0.0
    %753 = vmatprep.subr.mxu0 0.0
    %754 = vmatpush2.msra.mxu0 0.0
    %755 = vmatprep.subr.mxu0 0.0
    %756 = vmatpush2.msra.mxu0 0.0
    %757 = vmatprep.subr.mxu0 0.0
    %758 = vmatpush2.msra.mxu0 0.0
    %759 = vmatprep.subr.mxu0 0.0
    %760 = vmatpush2.msra.mxu0 0.0
    %761 = vmatprep.subr.mxu0 0.0
    %762 = vmatpush2.msra.mxu0 0.0
    %763 = vmatprep.subr.mxu0 0.0
    %764 = vmatpush2.msra.mxu0 0.0
    %765 = vmatprep.subr.mxu0 0.0
    %766 = vmatpush2.msra.mxu0 0.0
    %767 = vmatprep.subr.mxu0 0.0
    %768 = vmatpush2.msra.mxu0 0.0
    %769 = vmatprep.subr.mxu0 0.0
    %770 = vmatpush2.msra.mxu0 0.0
    %771 = vmatprep.mubr.f32.mxu0 0.0
    %772 = vmatmul.mubr.f32.gmra.mxu0 %v539
    %v773 = vpop.f32.mrf.mxu0
    %v774 = vadd.f32 %v705, %v773
    %v775 = vpop.f32.mrf.mxu0
    %776 = vdwg.mxu0
    %v777 = vmax.f32 %v774, 0.0
    %s778 = scalar_lea.vmem %s9, 16
    %v779 = vld [vmem:[%s778] sm:$0xff]
    %v780 = vld [vmem:[%s778 + $0x8] sm:$0xff]
    %s781 = scalar_lea.vmem %s10, 1
    %v782 = vld [vmem:[%s781] sm:$0x1]
    %v784 = vlaneseq
    %v785 = vshrl.u32 %v784, 7
    %v786 = vsub.s32 0, %v785
    %v787 = vrot.slane %v782, %v786
    %v790 = vsel %vm45, %v777, 0
    %792 = vmatprep.subr.mxu0 0.0
    %793 = vmatpush1.msra.mxu0 0.0
    %794 = vmatprep.subr.mxu0 0.0
    %795 = vmatpush1.msra.mxu0 0.0
    %796 = vmatprep.subr.mxu0 0.0
    %797 = vmatpush1.msra.mxu0 0.0
    %798 = vmatprep.subr.mxu0 0.0
    %799 = vmatpush1.msra.mxu0 0.0
    %800 = vmatprep.subr.mxu0 0.0
    %801 = vmatpush1.msra.mxu0 0.0
    %802 = vmatprep.subr.mxu0 0.0
    %803 = vmatpush1.msra.mxu0 0.0
    %804 = vmatprep.subr.mxu0 0.0
    %805 = vmatpush1.msra.mxu0 0.0
    %806 = vmatprep.subr.mxu0 0.0
    %807 = vmatpush1.msra.mxu0 0.0
    %808 = vmatprep.subr.mxu0 0.0
    %809 = vmatpush1.msra.mxu0 0.0
    %810 = vmatprep.subr.mxu0 0.0
    %811 = vmatpush1.msra.mxu0 0.0
    %812 = vmatprep.subr.mxu0 0.0
    %813 = vmatpush1.msra.mxu0 0.0
    %814 = vmatprep.subr.mxu0 0.0
    %815 = vmatpush1.msra.mxu0 0.0
    %816 = vmatprep.subr.mxu0 0.0
    %817 = vmatpush1.msra.mxu0 0.0
    %818 = vmatprep.subr.mxu0 0.0
    %819 = vmatpush1.msra.mxu0 0.0
    %820 = vmatprep.subr.mxu0 0.0
    %821 = vmatpush1.msra.mxu0 %v780
    %822 = vmatprep.subr.mxu0 0.0
    %823 = vmatpush1.msra.mxu0 %v779
    %824 = vmatprep.subr.mxu0 0.0
    %825 = vmatpush2.msra.mxu0 0.0
    %826 = vmatprep.subr.mxu0 0.0
    %827 = vmatpush2.msra.mxu0 0.0
    %828 = vmatprep.subr.mxu0 0.0
    %829 = vmatpush2.msra.mxu0 0.0
    %830 = vmatprep.subr.mxu0 0.0
    %831 = vmatpush2.msra.mxu0 0.0
    %832 = vmatprep.subr.mxu0 0.0
    %833 = vmatpush2.msra.mxu0 0.0
    %834 = vmatprep.subr.mxu0 0.0
    %835 = vmatpush2.msra.mxu0 0.0
    %836 = vmatprep.subr.mxu0 0.0
    %837 = vmatpush2.msra.mxu0 0.0
    %838 = vmatprep.subr.mxu0 0.0
    %839 = vmatpush2.msra.mxu0 0.0
    %840 = vmatprep.subr.mxu0 0.0
    %841 = vmatpush2.msra.mxu0 0.0
    %842 = vmatprep.subr.mxu0 0.0
    %843 = vmatpush2.msra.mxu0 0.0
    %844 = vmatprep.subr.mxu0 0.0
    %845 = vmatpush2.msra.mxu0 0.0
    %846 = vmatprep.subr.mxu0 0.0
    %847 = vmatpush2.msra.mxu0 0.0
    %848 = vmatprep.subr.mxu0 0.0
    %849 = vmatpush2.msra.mxu0 0.0
    %850 = vmatprep.subr.mxu0 0.0
    %851 = vmatpush2.msra.mxu0 0.0
    %852 = vmatprep.subr.mxu0 0.0
    %853 = vmatpush2.msra.mxu0 0.0
    %854 = vmatprep.subr.mxu0 0.0
    %855 = vmatpush2.msra.mxu0 0.0
    %856 = vmatprep.mubr.f32.mxu0 0.0
    %857 = vmatmul.mubr.f32.gmra.mxu0 %v790
    %v858 = vpop.f32.mrf.mxu0
    %v859 = vadd.f32 %v787, %v858
    %v860 = vpop.f32.mrf.mxu0
    %861 = vdwg.mxu0
    %s862 = scalar_lea.vmem %s7, 64
    %v863 = vld [vmem:[%s862] sm:$0xff]
    %v864 = vld [vmem:[%s862 + $0x8] sm:$0xff]
    %v865 = vld [vmem:[%s862 + $0x10] sm:$0xff]
    %v866 = vld [vmem:[%s862 + $0x18] sm:$0xff]
    %s867 = scalar_lea.vmem %s8, 2
    %v868 = vld [vmem:[%s867] sm:$0x1]
    %v870 = vlaneseq
    %v871 = vshrl.u32 %v870, 7
    %v872 = vsub.s32 0, %v871
    %v873 = vrot.slane %v868, %v872
    %875 = vmatprep.subr.mxu0 0.0
    %876 = vmatpush1.msra.mxu0 0.0
    %877 = vmatprep.subr.mxu0 0.0
    %878 = vmatpush1.msra.mxu0 0.0
    %879 = vmatprep.subr.mxu0 0.0
    %880 = vmatpush1.msra.mxu0 0.0
    %881 = vmatprep.subr.mxu0 0.0
    %882 = vmatpush1.msra.mxu0 0.0
    %883 = vmatprep.subr.mxu0 0.0
    %884 = vmatpush1.msra.mxu0 0.0
    %885 = vmatprep.subr.mxu0 0.0
    %886 = vmatpush1.msra.mxu0 0.0
    %887 = vmatprep.subr.mxu0 0.0
    %888 = vmatpush1.msra.mxu0 0.0
    %889 = vmatprep.subr.mxu0 0.0
    %890 = vmatpush1.msra.mxu0 0.0
    %891 = vmatprep.subr.mxu0 0.0
    %892 = vmatpush1.msra.mxu0 0.0
    %893 = vmatprep.subr.mxu0 0.0
    %894 = vmatpush1.msra.mxu0 0.0
    %895 = vmatprep.subr.mxu0 0.0
    %896 = vmatpush1.msra.mxu0 0.0
    %897 = vmatprep.subr.mxu0 0.0
    %898 = vmatpush1.msra.mxu0 0.0
    %899 = vmatprep.subr.mxu0 0.0
    %900 = vmatpush1.msra.mxu0 %v866
    %901 = vmatprep.subr.mxu0 0.0
    %902 = vmatpush1.msra.mxu0 %v865
    %903 = vmatprep.subr.mxu0 0.0
    %904 = vmatpush1.msra.mxu0 %v864
    %905 = vmatprep.subr.mxu0 0.0
    %906 = vmatpush1.msra.mxu0 %v863
    %907 = vmatprep.subr.mxu0 0.0
    %908 = vmatpush2.msra.mxu0 0.0
    %909 = vmatprep.subr.mxu0 0.0
    %910 = vmatpush2.msra.mxu0 0.0
    %911 = vmatprep.subr.mxu0 0.0
    %912 = vmatpush2.msra.mxu0 0.0
    %913 = vmatprep.subr.mxu0 0.0
    %914 = vmatpush2.msra.mxu0 0.0
    %915 = vmatprep.subr.mxu0 0.0
    %916 = vmatpush2.msra.mxu0 0.0
    %917 = vmatprep.subr.mxu0 0.0
    %918 = vmatpush2.msra.mxu0 0.0
    %919 = vmatprep.subr.mxu0 0.0
    %920 = vmatpush2.msra.mxu0 0.0
    %921 = vmatprep.subr.mxu0 0.0
    %922 = vmatpush2.msra.mxu0 0.0
    %923 = vmatprep.subr.mxu0 0.0
    %924 = vmatpush2.msra.mxu0 0.0
    %925 = vmatprep.subr.mxu0 0.0
    %926 = vmatpush2.msra.mxu0 0.0
    %927 = vmatprep.subr.mxu0 0.0
    %928 = vmatpush2.msra.mxu0 0.0
    %929 = vmatprep.subr.mxu0 0.0
    %930 = vmatpush2.msra.mxu0 0.0
    %931 = vmatprep.subr.mxu0 0.0
    %932 = vmatpush2.msra.mxu0 0.0
    %933 = vmatprep.subr.mxu0 0.0
    %934 = vmatpush2.msra.mxu0 0.0
    %935 = vmatprep.subr.mxu0 0.0
    %936 = vmatpush2.msra.mxu0 0.0
    %937 = vmatprep.subr.mxu0 0.0
    %938 = vmatpush2.msra.mxu0 0.0
    %939 = vmatprep.mubr.f32.mxu0 0.0
    %940 = vmatmul.mubr.f32.gmra.mxu0 %v539
    %v941 = vpop.f32.mrf.mxu0
    %v942 = vadd.f32 %v873, %v941
    %v943 = vpop.f32.mrf.mxu0
    %944 = vdwg.mxu0
    %v945 = vmax.f32 %v942, 0.0
    %s946 = scalar_lea.vmem %s9, 32
    %v947 = vld [vmem:[%s946] sm:$0xff]
    %v948 = vld [vmem:[%s946 + $0x8] sm:$0xff]
    %s949 = scalar_lea.vmem %s10, 2
    %v950 = vld [vmem:[%s949] sm:$0x1]
    %v952 = vlaneseq
    %v953 = vshrl.u32 %v952, 7
    %v954 = vsub.s32 0, %v953
    %v955 = vrot.slane %v950, %v954
    %v958 = vsel %vm45, %v945, 0
    %960 = vmatprep.subr.mxu0 0.0
    %961 = vmatpush1.msra.mxu0 0.0
    %962 = vmatprep.subr.mxu0 0.0
    %963 = vmatpush1.msra.mxu0 0.0
    %964 = vmatprep.subr.mxu0 0.0
    %965 = vmatpush1.msra.mxu0 0.0
    %966 = vmatprep.subr.mxu0 0.0
    %967 = vmatpush1.msra.mxu0 0.0
    %968 = vmatprep.subr.mxu0 0.0
    %969 = vmatpush1.msra.mxu0 0.0
    %970 = vmatprep.subr.mxu0 0.0
    %971 = vmatpush1.msra.mxu0 0.0
    %972 = vmatprep.subr.mxu0 0.0
    %973 = vmatpush1.msra.mxu0 0.0
    %974 = vmatprep.subr.mxu0 0.0
    %975 = vmatpush1.msra.mxu0 0.0
    %976 = vmatprep.subr.mxu0 0.0
    %977 = vmatpush1.msra.mxu0 0.0
    %978 = vmatprep.subr.mxu0 0.0
    %979 = vmatpush1.msra.mxu0 0.0
    %980 = vmatprep.subr.mxu0 0.0
    %981 = vmatpush1.msra.mxu0 0.0
    %982 = vmatprep.subr.mxu0 0.0
    %983 = vmatpush1.msra.mxu0 0.0
    %984 = vmatprep.subr.mxu0 0.0
    %985 = vmatpush1.msra.mxu0 0.0
    %986 = vmatprep.subr.mxu0 0.0
    %987 = vmatpush1.msra.mxu0 0.0
    %988 = vmatprep.subr.mxu0 0.0
    %989 = vmatpush1.msra.mxu0 %v948
    %990 = vmatprep.subr.mxu0 0.0
    %991 = vmatpush1.msra.mxu0 %v947
    %992 = vmatprep.subr.mxu0 0.0
    %993 = vmatpush2.msra.mxu0 0.0
    %994 = vmatprep.subr.mxu0 0.0
    %995 = vmatpush2.msra.mxu0 0.0
    %996 = vmatprep.subr.mxu0 0.0
    %997 = vmatpush2.msra.mxu0 0.0
    %998 = vmatprep.subr.mxu0 0.0
    %999 = vmatpush2.msra.mxu0 0.0
    %1000 = vmatprep.subr.mxu0 0.0
    %1001 = vmatpush2.msra.mxu0 0.0
    %1002 = vmatprep.subr.mxu0 0.0
    %1003 = vmatpush2.msra.mxu0 0.0
    %1004 = vmatprep.subr.mxu0 0.0
    %1005 = vmatpush2.msra.mxu0 0.0
    %1006 = vmatprep.subr.mxu0 0.0
    %1007 = vmatpush2.msra.mxu0 0.0
    %1008 = vmatprep.subr.mxu0 0.0
    %1009 = vmatpush2.msra.mxu0 0.0
    %1010 = vmatprep.subr.mxu0 0.0
    %1011 = vmatpush2.msra.mxu0 0.0
    %1012 = vmatprep.subr.mxu0 0.0
    %1013 = vmatpush2.msra.mxu0 0.0
    %1014 = vmatprep.subr.mxu0 0.0
    %1015 = vmatpush2.msra.mxu0 0.0
    %1016 = vmatprep.subr.mxu0 0.0
    %1017 = vmatpush2.msra.mxu0 0.0
    %1018 = vmatprep.subr.mxu0 0.0
    %1019 = vmatpush2.msra.mxu0 0.0
    %1020 = vmatprep.subr.mxu0 0.0
    %1021 = vmatpush2.msra.mxu0 0.0
    %1022 = vmatprep.subr.mxu0 0.0
    %1023 = vmatpush2.msra.mxu0 0.0
    %1024 = vmatprep.mubr.f32.mxu0 0.0
    %1025 = vmatmul.mubr.f32.gmra.mxu0 %v958
    %v1026 = vpop.f32.mrf.mxu0
    %v1027 = vadd.f32 %v955, %v1026
    %v1028 = vpop.f32.mrf.mxu0
    %1029 = vdwg.mxu0
    %1031 = vrot.lane.b32.xlu0 %v859, 2
    %v1032 = vpop.permute.xlu0 %1031
    %1035 = vrot.lane.b32.xlu0 %v1027, 4
    %v1036 = vpop.permute.xlu0 %1035
    %vm1038 = vcmask 15360
    %v1039 = vsel %vm1038, %v691, %v1032
    %vm1040 = vcmask 31744
    %v1041 = vsel %vm1040, %v1039, %v1036
    %vm1042 = vcmask 44032
    %1043 = vst.msk [vmem:[#allocation2] sm:$0xf] %vm1042, %v1041
    // Predicated region
    $region46: #{tpu_custom_call.1} parent=1 // pred_check
      _
    $region47: #{tpu_custom_call.1} parent=1 // pred_check_branch
      %1045 = sbr.rel (0) target = $region49
    $region48: #{tpu_custom_call.1} parent=1 // pred_region
      %s1047 = ssub.s32 64, 64
      %1048 = vsyncadd [#allocation3], %s1047
      %s1050 = sshll.u32 [#allocation2], 4
      %s1051 = int_to_ptr.vmem [resolvable:$true] %s1050
      %1053 = dma.vmem_to_hbm [thread:$0]  %s1051, 64, %s11, [#allocation3]
    $region49: #{tpu_custom_call.1} parent=1 // pred_fallthru
      _
    // Predicated region
    $region50: #{tpu_custom_call.1} parent=1 // pred_check
      _
    $region51: #{tpu_custom_call.1} parent=1 // pred_check_branch
      %1055 = sbr.rel (0) target = $region53
    $region52: #{tpu_custom_call.1} parent=1 // pred_region
      %1056 = dma.done [#allocation3], 64
    $region53: #{tpu_custom_call.1} parent=1 // pred_fallthru
      _
    %1057 = vsyncpa [#allocation3], 1

</llo_original>
